<compile_context>
chip_gen: v7x
topology: tpu7x:2x2x1
jax: 0.10.0
libtpu: 0.0.40
codegen_flags: <defaults>
</compile_context>

<pallas_src>
import functools

import jax
import jax.numpy as jnp
from jax import lax
from jax.experimental import pallas as pl
from jax.experimental.pallas import tpu as pltpu

LANE = 128            # TPU vreg lane width
SUB_B = 256           # in-kernel batch sub-tile (columns of the CN activations)
MAX_BLOCK_B = 2048    # per-grid-step batch tile upper bound


def _round_up(x, m):
    return ((x + m - 1) // m) * m


def _device_kind():
    try:
        return jax.devices()[0].device_kind.lower()
    except Exception:
        return ""


def _default_use_bf16_tanh():
    # bf16 VPU/EUP exists on v6e and later; keep f32 tanh on v5e/v4.
    kind = _device_kind()
    return ("v6" in kind) or ("v7" in kind) or ("tpu7" in kind)


def _num_tensorcores():
    kind = _device_kind()
    return 2 if (("v7" in kind) or ("tpu7" in kind)) else 1


def _pick_block_b(batch, num_tc):
    """Batch tile size.  Always <= batch, so edge blocks are ordinary ragged tails."""
    if num_tc >= 2 and batch > LANE:
        # >=2 grid steps so the "parallel" batch axis shards across both TensorCores.
        per_core = _round_up(pl.cdiv(batch, num_tc), LANE)
        return min(per_core, MAX_BLOCK_B, batch)
    # Single TensorCore: fewest, fattest grid steps.
    return min(batch, MAX_BLOCK_B)


def densenet_kernel(x_ref, w1_ref, b1_ref, w2_ref, b2_ref, w3_ref, b3_ref,
                    o_ref, *, block_b, sub_b, act_dtype):
    """Fused Linear->Tanh->Linear->Tanh->Linear on one batch tile.

    x_ref : (block_b, in_dim)     native layout (batch on sublanes)
    wN    : (out_f, in_f)         PyTorch nn.Linear layout
    b1/b2 : (hidden, 1)           broadcast along the lane (batch) axis
    b3    : (1, out_dim)          broadcast along the sublane (batch) axis
    o_ref : (block_b, out_dim)    native layout
    Intermediates live in lane-dense CN layout (hidden, sub_b).
    """

    def compute(start, size):
        xs = x_ref[pl.ds(start, size), :]                          # (size, in)
        # layer 1: (hidden, size) = W1 @ xs^T   (rhs-transposed MXU matmul)
        z1 = lax.dot_general(w1_ref[...], xs, (((1,), (1,)), ((), ())),
                             preferred_element_type=jnp.float32) + b1_ref[...]
        h1 = jnp.tanh(z1.astype(act_dtype)).astype(jnp.float32)
        # layer 2: (hidden, size) = W2 @ h1     (standard MXU matmul)
        z2 = lax.dot_general(w2_ref[...], h1, (((1,), (0,)), ((), ())),
                             preferred_element_type=jnp.float32) + b2_ref[...]
        h2 = jnp.tanh(z2.astype(act_dtype)).astype(jnp.float32)
        # layer 3 back in native layout: (size, out) = h2^T @ W3^T
        y = lax.dot_general(h2.T, w3_ref[...], (((1,), (1,)), ((), ())),
                            preferred_element_type=jnp.float32) + b3_ref[...]
        o_ref[pl.ds(start, size), :] = y.astype(o_ref.dtype)

    n_full, tail = divmod(block_b, sub_b)
    if n_full == 0:
        compute(0, tail)
    else:
        if n_full == 1:
            compute(0, sub_b)
        else:
            def body(s, carry):
                compute(pl.multiple_of(s * sub_b, sub_b), sub_b)
                return carry
            lax.fori_loop(0, n_full, body, 0, unroll=True)
        if tail:
            compute(n_full * sub_b, tail)


@functools.partial(jax.jit, static_argnames=("block_b", "use_bf16_tanh"))
def _densenet_impl(x, w1, b1, w2, b2, w3, b3, *, block_b, use_bf16_tanh):
    B, in_dim = x.shape
    hidden_dim = w1.shape[0]
    out_dim = w3.shape[0]
    n_blocks = pl.cdiv(B, block_b)
    sub_b = min(block_b, SUB_B)
    act_dtype = jnp.bfloat16 if use_bf16_tanh else jnp.float32

    # Biases: columns for the CN layers, a row for the native-layout output layer.
    b1c = b1.reshape(hidden_dim, 1)
    b2c = b2.reshape(hidden_dim, 1)
    b3r = b3.reshape(1, out_dim)

    const = lambda i: (0, 0)   # grid-invariant operands: DMA'd into VMEM once
    in_specs = [
        pl.BlockSpec((block_b, in_dim), lambda i: (i, 0)),        # x (native)
        pl.BlockSpec((hidden_dim, in_dim), const),                # W1
        pl.BlockSpec((hidden_dim, 1), const),                     # b1
        pl.BlockSpec((hidden_dim, hidden_dim), const),            # W2
        pl.BlockSpec((hidden_dim, 1), const),                     # b2
        pl.BlockSpec((out_dim, hidden_dim), const),               # W3
        pl.BlockSpec((1, out_dim), const),                        # b3
    ]
    out_specs = pl.BlockSpec((block_b, out_dim), lambda i: (i, 0))

    itemsize = jnp.dtype(x.dtype).itemsize
    b_eff = n_blocks * block_b
    flops = 2 * b_eff * (in_dim * hidden_dim + hidden_dim * hidden_dim
                         + hidden_dim * out_dim)
    bytes_accessed = itemsize * (
        B * (in_dim + out_dim)
        + hidden_dim * (in_dim + hidden_dim + out_dim) + 2 * hidden_dim + out_dim)

    # Explicit VMEM budget: double-buffered x/y tiles, one copy of params
    # (constant index_map), live CN activations — with generous headroom.
    vmem_need = itemsize * (
        2 * block_b * (in_dim + out_dim)
        + 2 * (hidden_dim * (in_dim + hidden_dim + out_dim) + 2 * hidden_dim + out_dim)
        + 4 * sub_b * hidden_dim)
    vmem_limit_bytes = int(min(max(4 * vmem_need, 16 * 1024 * 1024),
                               64 * 1024 * 1024))

    kernel = functools.partial(densenet_kernel, block_b=block_b, sub_b=sub_b,
                               act_dtype=act_dtype)
    return pl.pallas_call(
        kernel,
        out_shape=jax.ShapeDtypeStruct((B, out_dim), x.dtype),
        grid_spec=pltpu.PrefetchScalarGridSpec(
            num_scalar_prefetch=0,
            grid=(n_blocks,),
            in_specs=in_specs,
            out_specs=out_specs,
        ),
        compiler_params=pltpu.CompilerParams(
            dimension_semantics=("parallel",),
            vmem_limit_bytes=vmem_limit_bytes),
        cost_estimate=pl.CostEstimate(
            flops=flops,
            transcendentals=2 * b_eff * hidden_dim,
            bytes_accessed=bytes_accessed),
    )(x, w1, b1c, w2, b2c, w3, b3r)


def densenet_forward(x, w1, b1, w2, b2, w3, b3, *, block_b=None,
                     use_bf16_tanh=None):
    """y = L3(tanh(L2(tanh(L1(x))))) with PyTorch (out,in) weights, (out,) biases."""
    if use_bf16_tanh is None:
        use_bf16_tanh = _default_use_bf16_tanh()
    if block_b is None:
        block_b = _pick_block_b(int(x.shape[0]), _num_tensorcores())
    return _densenet_impl(x, w1, b1, w2, b2, w3, b3,
                          block_b=int(block_b), use_bf16_tanh=bool(use_bf16_tanh))


def densenet_reference(x, w1, b1, w2, b2, w3, b3):
    h1 = jnp.tanh(x @ w1.T + b1)
    h2 = jnp.tanh(h1 @ w2.T + b2)
    return h2 @ w3.T + b3


if __name__ == "__main__":
    # Small shapes consistent with the module: DenseNet(in_dim=4, out_dim=4,
    # hidden_dim=32) applied to a batch of 8 vectors.
    in_dim, out_dim, hidden_dim = 4, 4, 32
    batch = 8

    key = jax.random.PRNGKey(0)
    kx, k1, kb1, k2, kb2, k3, kb3 = jax.random.split(key, 7)

    x = jax.random.normal(kx, (batch, in_dim), dtype=jnp.float32)

    # Deterministic synthetic parameters, PyTorch nn.Linear layout + init scale.
    def uinit(k, shape, fan_in):
        bound = 1.0 / jnp.sqrt(jnp.float32(fan_in))
        return jax.random.uniform(k, shape, jnp.float32, -bound, bound)

    w1 = uinit(k1, (hidden_dim, in_dim), in_dim)
    b1 = uinit(kb1, (hidden_dim,), in_dim)
    w2 = uinit(k2, (hidden_dim, hidden_dim), hidden_dim)
    b2 = uinit(kb2, (hidden_dim,), hidden_dim)
    w3 = uinit(k3, (out_dim, hidden_dim), hidden_dim)
    b3 = uinit(kb3, (out_dim,), hidden_dim)

    ref = densenet_reference(x, w1, b1, w2, b2, w3, b3)

    # Strict check with f32 activations (valid on every TPU generation).
    out_f32 = jax.block_until_ready(
        densenet_forward(x, w1, b1, w2, b2, w3, b3, use_bf16_tanh=False))
    assert out_f32.shape == (batch, out_dim)
    assert jnp.allclose(out_f32, ref, atol=1e-5, rtol=1e-5), "f32 mismatch vs reference"

    # Generation-tuned default path (bf16 tanh on v6e/v7x -> looser tolerance).
    out = jax.block_until_ready(densenet_forward(x, w1, b1, w2, b2, w3, b3))
    assert out.shape == (batch, out_dim)
    tol = 1e-1 if _default_use_bf16_tanh() else 1e-5
    assert jnp.allclose(out, ref, atol=tol, rtol=tol), "mismatch vs reference"

    print("KERNEL_OK")
</pallas_src>

<mosaic_0001>
module attributes {stable_mosaic.version = 11 : i64} {
  func.func @densenet_kernel(%arg0: i32, %arg1: memref<8x4xf32, #tpu.memory_space<vmem>>, %arg2: memref<32x4xf32, #tpu.memory_space<vmem>>, %arg3: memref<32x1xf32, #tpu.memory_space<vmem>>, %arg4: memref<32x32xf32, #tpu.memory_space<vmem>>, %arg5: memref<32x1xf32, #tpu.memory_space<vmem>>, %arg6: memref<4x32xf32, #tpu.memory_space<vmem>>, %arg7: memref<1x4xf32, #tpu.memory_space<vmem>>, %arg8: memref<8x4xf32, #tpu.memory_space<vmem>>) attributes {dimension_semantics = [#tpu.dimension_semantics<parallel>], iteration_bounds = array<i64: 1>, scalar_prefetch = 0 : i64, scratch_operands = 0 : i64, tpu.core_type = #tpu.core_type<tc>, window_params = [{transform_indices = @transform_0, window_bounds = array<i64: 8, 4>}, {pipeline_mode = #tpu.pipeline_mode<synchronous>, transform_indices = @transform_1, window_bounds = array<i64: 32, 4>}, {pipeline_mode = #tpu.pipeline_mode<synchronous>, transform_indices = @transform_2, window_bounds = array<i64: 32, 1>}, {pipeline_mode = #tpu.pipeline_mode<synchronous>, transform_indices = @transform_3, window_bounds = array<i64: 32, 32>}, {pipeline_mode = #tpu.pipeline_mode<synchronous>, transform_indices = @transform_4, window_bounds = array<i64: 32, 1>}, {pipeline_mode = #tpu.pipeline_mode<synchronous>, transform_indices = @transform_5, window_bounds = array<i64: 4, 32>}, {pipeline_mode = #tpu.pipeline_mode<synchronous>, transform_indices = @transform_6, window_bounds = array<i64: 1, 4>}, {transform_indices = @transform_7, window_bounds = array<i64: 8, 4>}]} {
    %c0 = arith.constant 0 : index
    %c0_0 = arith.constant 0 : index
    %0 = vector.load %arg1[%c0, %c0_0] : memref<8x4xf32, #tpu.memory_space<vmem>>, vector<8x4xf32>
    %c0_1 = arith.constant 0 : index
    %c0_2 = arith.constant 0 : index
    %1 = vector.load %arg2[%c0_1, %c0_2] : memref<32x4xf32, #tpu.memory_space<vmem>>, vector<32x4xf32>
    %cst = arith.constant dense<0.000000e+00> : vector<32x8xf32>
    %2 = tpu.matmul %1, %0, %cst {dimension_numbers = #tpu.dot_dimension_numbers<[1], [1], [0], [0], [0, 0, 1, 0], [], []>} : vector<32x4xf32>, vector<8x4xf32>, vector<32x8xf32> -> vector<32x8xf32>
    %c0_3 = arith.constant 0 : index
    %c0_4 = arith.constant 0 : index
    %3 = vector.load %arg3[%c0_3, %c0_4] : memref<32x1xf32, #tpu.memory_space<vmem>>, vector<32x1xf32>
    %4 = vector.broadcast %3 : vector<32x1xf32> to vector<32x8xf32>
    %5 = arith.addf %2, %4 : vector<32x8xf32>
    %6 = math.tanh %5 : vector<32x8xf32>
    %c0_5 = arith.constant 0 : index
    %c0_6 = arith.constant 0 : index
    %7 = vector.load %arg4[%c0_5, %c0_6] : memref<32x32xf32, #tpu.memory_space<vmem>>, vector<32x32xf32>
    %cst_7 = arith.constant dense<0.000000e+00> : vector<32x8xf32>
    %8 = tpu.matmul %7, %6, %cst_7 {dimension_numbers = #tpu.dot_dimension_numbers<[1], [0], [0], [1], [0, 0, 1, 1], [], []>} : vector<32x32xf32>, vector<32x8xf32>, vector<32x8xf32> -> vector<32x8xf32>
    %c0_8 = arith.constant 0 : index
    %c0_9 = arith.constant 0 : index
    %9 = vector.load %arg5[%c0_8, %c0_9] : memref<32x1xf32, #tpu.memory_space<vmem>>, vector<32x1xf32>
    %10 = vector.broadcast %9 : vector<32x1xf32> to vector<32x8xf32>
    %11 = arith.addf %8, %10 : vector<32x8xf32>
    %12 = math.tanh %11 : vector<32x8xf32>
    %13 = tpu.transpose %12, [1, 0] : vector<32x8xf32> -> vector<8x32xf32>
    %c0_10 = arith.constant 0 : index
    %c0_11 = arith.constant 0 : index
    %14 = vector.load %arg6[%c0_10, %c0_11] : memref<4x32xf32, #tpu.memory_space<vmem>>, vector<4x32xf32>
    %cst_12 = arith.constant dense<0.000000e+00> : vector<8x4xf32>
    %15 = tpu.matmul %13, %14, %cst_12 {dimension_numbers = #tpu.dot_dimension_numbers<[1], [1], [0], [0], [0, 0, 1, 0], [], []>} : vector<8x32xf32>, vector<4x32xf32>, vector<8x4xf32> -> vector<8x4xf32>
    %c0_13 = arith.constant 0 : index
    %c0_14 = arith.constant 0 : index
    %16 = vector.load %arg7[%c0_13, %c0_14] : memref<1x4xf32, #tpu.memory_space<vmem>>, vector<1x4xf32>
    %17 = vector.broadcast %16 : vector<1x4xf32> to vector<8x4xf32>
    %18 = arith.addf %15, %17 : vector<8x4xf32>
    %c0_15 = arith.constant 0 : index
    %c0_16 = arith.constant 0 : index
    %19 = vector.load %arg8[%c0_15, %c0_16] : memref<8x4xf32, #tpu.memory_space<vmem>>, vector<8x4xf32>
    tpu.vector_store %arg8[%c0_15, %c0_16], %18 {strides = array<i32>} : memref<8x4xf32, #tpu.memory_space<vmem>>, vector<8x4xf32>,
    return
  }
  func.func @transform_0(%arg0: i32) -> (i32, i32) {
    %c0_i32 = arith.constant 0 : i32
    %c0_i32_0 = arith.constant 0 : i32
    return %arg0, %c0_i32 : i32, i32
  }
  func.func @transform_1(%arg0: i32) -> (i32, i32) {
    %c0_i32 = arith.constant 0 : i32
    %c0_i32_0 = arith.constant 0 : i32
    %c0_i32_1 = arith.constant 0 : i32
    return %c0_i32, %c0_i32_0 : i32, i32
  }
  func.func @transform_2(%arg0: i32) -> (i32, i32) {
    %c0_i32 = arith.constant 0 : i32
    %c0_i32_0 = arith.constant 0 : i32
    %c0_i32_1 = arith.constant 0 : i32
    return %c0_i32, %c0_i32_0 : i32, i32
  }
  func.func @transform_3(%arg0: i32) -> (i32, i32) {
    %c0_i32 = arith.constant 0 : i32
    %c0_i32_0 = arith.constant 0 : i32
    %c0_i32_1 = arith.constant 0 : i32
    return %c0_i32, %c0_i32_0 : i32, i32
  }
  func.func @transform_4(%arg0: i32) -> (i32, i32) {
    %c0_i32 = arith.constant 0 : i32
    %c0_i32_0 = arith.constant 0 : i32
    %c0_i32_1 = arith.constant 0 : i32
    return %c0_i32, %c0_i32_0 : i32, i32
  }
  func.func @transform_5(%arg0: i32) -> (i32, i32) {
    %c0_i32 = arith.constant 0 : i32
    %c0_i32_0 = arith.constant 0 : i32
    %c0_i32_1 = arith.constant 0 : i32
    return %c0_i32, %c0_i32_0 : i32, i32
  }
  func.func @transform_6(%arg0: i32) -> (i32, i32) {
    %c0_i32 = arith.constant 0 : i32
    %c0_i32_0 = arith.constant 0 : i32
    %c0_i32_1 = arith.constant 0 : i32
    return %c0_i32, %c0_i32_0 : i32, i32
  }
  func.func @transform_7(%arg0: i32) -> (i32, i32) {
    %c0_i32 = arith.constant 0 : i32
    %c0_i32_0 = arith.constant 0 : i32
    return %arg0, %c0_i32 : i32, i32
  }
}

</mosaic_0001>

<llo_original>
// kernel: _densenet_impl.1
$region0: #{_densenet_impl.1}
  #allocation0 [shape = 'u32[]', space=smem, size = 0x4, offset = 0x4, fixed_abs, tag = 'smem constant byte address 0x4 - core index']
  #allocation1 [shape = 'u32[144,128]{1,0:T(1,128)}', space=vmem, size = 0x12000, scoped, tag = 'internal scratch']
  %s0 = inlined_call_operand.vmem [shape: f32[8,4], index: 0, kind: input, shape index: {}]
  %s1 = inlined_call_operand.vmem [shape: f32[32,4], index: 1, kind: input, shape index: {}]
  %s2 = inlined_call_operand.vmem [shape: f32[32,1], index: 2, kind: input, shape index: {}]
  %s3 = inlined_call_operand.vmem [shape: f32[32,32], index: 3, kind: input, shape index: {}]
  %s4 = inlined_call_operand.vmem [shape: f32[32,1], index: 4, kind: input, shape index: {}]
  %s5 = inlined_call_operand.vmem [shape: f32[4,32], index: 5, kind: input, shape index: {}]
  %s6 = inlined_call_operand.vmem [shape: f32[1,4], index: 6, kind: input, shape index: {}]
  %s7 = inlined_call_operand.vmem [shape: f32[8,4], index: 7, kind: output, shape index: {}]
  %s8 = sld [smem:[#allocation0]]
  $region38: #{_densenet_impl.1} parent=0
    _
  %s10 = ssub.s32 1, %s8
  %s11 = scalar_select 0, %s10, %s8
  // Predicated region
  $region2: #{_densenet_impl.1} parent=0 // pred_check
    _
  $region3: #{_densenet_impl.1} parent=0 // pred_check_branch
    %13 = sbr.rel (0) target = $region5
  $region4: #{_densenet_impl.1} parent=0 // pred_region
    _
  $region5: #{_densenet_impl.1} parent=0 // pred_fallthru
    _
  // Predicated region
  $region6: #{_densenet_impl.1} parent=0 // pred_check
    _
  $region7: #{_densenet_impl.1} parent=0 // pred_check_branch
    %15 = sbr.rel (0) target = $region9
  $region8: #{_densenet_impl.1} parent=0 // pred_region
    _
  $region9: #{_densenet_impl.1} parent=0 // pred_fallthru
    _
  // Predicated region
  $region10: #{_densenet_impl.1} parent=0 // pred_check
    _
  $region11: #{_densenet_impl.1} parent=0 // pred_check_branch
    %17 = sbr.rel (0) target = $region13
  $region12: #{_densenet_impl.1} parent=0 // pred_region
    _
  $region13: #{_densenet_impl.1} parent=0 // pred_fallthru
    _
  // Predicated region
  $region14: #{_densenet_impl.1} parent=0 // pred_check
    _
  $region15: #{_densenet_impl.1} parent=0 // pred_check_branch
    %19 = sbr.rel (0) target = $region17
  $region16: #{_densenet_impl.1} parent=0 // pred_region
    _
  $region17: #{_densenet_impl.1} parent=0 // pred_fallthru
    _
  // Predicated region
  $region18: #{_densenet_impl.1} parent=0 // pred_check
    _
  $region19: #{_densenet_impl.1} parent=0 // pred_check_branch
    %21 = sbr.rel (0) target = $region21
  $region20: #{_densenet_impl.1} parent=0 // pred_region
    _
  $region21: #{_densenet_impl.1} parent=0 // pred_fallthru
    _
  // Predicated region
  $region22: #{_densenet_impl.1} parent=0 // pred_check
    _
  $region23: #{_densenet_impl.1} parent=0 // pred_check_branch
    %23 = sbr.rel (0) target = $region25
  $region24: #{_densenet_impl.1} parent=0 // pred_region
    _
  $region25: #{_densenet_impl.1} parent=0 // pred_fallthru
    _
  // Predicated region
  $region26: #{_densenet_impl.1} parent=0 // pred_check
    _
  $region27: #{_densenet_impl.1} parent=0 // pred_check_branch
    %25 = sbr.rel (0) target = $region29
  $region28: #{_densenet_impl.1} parent=0 // pred_region
    _
  $region29: #{_densenet_impl.1} parent=0 // pred_fallthru
    _
  %v26 = vld [vmem:[%s0] sm:$0xff]
  %v27 = vld [vmem:[%s1] sm:$0xff]
  %v28 = vld [vmem:[%s1 + $0x8] sm:$0xff]
  %v29 = vld [vmem:[%s1 + $0x10] sm:$0xff]
  %v30 = vld [vmem:[%s1 + $0x18] sm:$0xff]
  %v31 = vld [vmem:[%s2] sm:$0xff]
  %v32 = vld [vmem:[%s2 + $0x8] sm:$0xff]
  %v33 = vld [vmem:[%s2 + $0x10] sm:$0xff]
  %v34 = vld [vmem:[%s2 + $0x18] sm:$0xff]
  %36 = vset.pattern.permute.xlu0 0
  %37 = vperm.xlu0 %36, %v31
  %v38 = vpop.permute.xlu0 %37
  %41 = vset.pattern.permute.xlu0 0
  %42 = vperm.xlu0 %41, %v32
  %v43 = vpop.permute.xlu0 %42
  %46 = vset.pattern.permute.xlu0 0
  %47 = vperm.xlu0 %46, %v33
  %v48 = vpop.permute.xlu0 %47
  %51 = vset.pattern.permute.xlu0 0
  %52 = vperm.xlu0 %51, %v34
  %v53 = vpop.permute.xlu0 %52
  %vm55 = vcmask 31744
  %v57 = vsel %vm55, %v27, 0
  %v60 = vsel %vm55, %v28, 0
  %v63 = vsel %vm55, %v29, 0
  %v66 = vsel %vm55, %v30, 0
  %v69 = vsel %vm55, %v26, 0
  %71 = vmatprep.subr.mxu0 0.0
  %72 = vmatpush1.xpose.msra.mxu0 %v69
  %73 = vmatprep.subr.mxu0 0.0
  %74 = vmatpush1.xpose.msra.mxu0 0.0
  %75 = vmatprep.subr.mxu0 0.0
  %76 = vmatpush1.xpose.msra.mxu0 0.0
  %77 = vmatprep.subr.mxu0 0.0
  %78 = vmatpush1.xpose.msra.mxu0 0.0
  %79 = vmatprep.subr.mxu0 0.0
  %80 = vmatpush1.xpose.msra.mxu0 0.0
  %81 = vmatprep.subr.mxu0 0.0
  %82 = vmatpush1.xpose.msra.mxu0 0.0
  %83 = vmatprep.subr.mxu0 0.0
  %84 = vmatpush1.xpose.msra.mxu0 0.0
  %85 = vmatprep.subr.mxu0 0.0
  %86 = vmatpush1.xpose.msra.mxu0 0.0
  %87 = vmatprep.subr.mxu0 0.0
  %88 = vmatpush1.xpose.msra.mxu0 0.0
  %89 = vmatprep.subr.mxu0 0.0
  %90 = vmatpush1.xpose.msra.mxu0 0.0
  %91 = vmatprep.subr.mxu0 0.0
  %92 = vmatpush1.xpose.msra.mxu0 0.0
  %93 = vmatprep.subr.mxu0 0.0
  %94 = vmatpush1.xpose.msra.mxu0 0.0
  %95 = vmatprep.subr.mxu0 0.0
  %96 = vmatpush1.xpose.msra.mxu0 0.0
  %97 = vmatprep.subr.mxu0 0.0
  %98 = vmatpush1.xpose.msra.mxu0 0.0
  %99 = vmatprep.subr.mxu0 0.0
  %100 = vmatpush1.xpose.msra.mxu0 0.0
  %101 = vmatprep.subr.mxu0 0.0
  %102 = vmatpush1.xpose.msra.mxu0 0.0
  %103 = vmatprep.subr.mxu0 0.0
  %104 = vmatpush1.xpose.msra.mxu0 0.0
  %105 = vmatprep.subr.mxu0 0.0
  %106 = vmatpush1.xpose.msra.mxu0 0.0
  %107 = vmatprep.subr.mxu0 0.0
  %108 = vmatpush1.xpose.msra.mxu0 0.0
  %109 = vmatprep.subr.mxu0 0.0
  %110 = vmatpush1.xpose.msra.mxu0 0.0
  %111 = vmatprep.subr.mxu0 0.0
  %112 = vmatpush1.xpose.msra.mxu0 0.0
  %113 = vmatprep.subr.mxu0 0.0
  %114 = vmatpush1.xpose.msra.mxu0 0.0
  %115 = vmatprep.subr.mxu0 0.0
  %116 = vmatpush1.xpose.msra.mxu0 0.0
  %117 = vmatprep.subr.mxu0 0.0
  %118 = vmatpush1.xpose.msra.mxu0 0.0
  %119 = vmatprep.subr.mxu0 0.0
  %120 = vmatpush1.xpose.msra.mxu0 0.0
  %121 = vmatprep.subr.mxu0 0.0
  %122 = vmatpush1.xpose.msra.mxu0 0.0
  %123 = vmatprep.subr.mxu0 0.0
  %124 = vmatpush1.xpose.msra.mxu0 0.0
  %125 = vmatprep.subr.mxu0 0.0
  %126 = vmatpush1.xpose.msra.mxu0 0.0
  %127 = vmatprep.subr.mxu0 0.0
  %128 = vmatpush1.xpose.msra.mxu0 0.0
  %129 = vmatprep.subr.mxu0 0.0
  %130 = vmatpush1.xpose.msra.mxu0 0.0
  %131 = vmatprep.subr.mxu0 0.0
  %132 = vmatpush1.xpose.msra.mxu0 0.0
  %133 = vmatprep.subr.mxu0 0.0
  %134 = vmatpush1.xpose.msra.mxu0 0.0
  %135 = vmatprep.mubr.f32.mxu0 0.0
  %136 = vmatmul.mubr.f32.gmra.mrb[0].mxu0 %v57
  %v137 = vpop.f32.mrb[0].mxu0
  %v138 = vadd.f32 %v38, %v137
  %v139 = vpop.f32.mrb[0].mxu0
  %140 = vmatprep.mubr.f32.mxu0 0.0
  %141 = vmatmul.mubr.f32.gmra.mrb[0].mxu0 %v60
  %v142 = vpop.f32.mrb[0].mxu0
  %v143 = vadd.f32 %v43, %v142
  %v144 = vpop.f32.mrb[0].mxu0
  %145 = vmatprep.mubr.f32.mxu0 0.0
  %146 = vmatmul.mubr.f32.gmra.mrb[0].mxu0 %v63
  %v147 = vpop.f32.mrb[0].mxu0
  %v148 = vadd.f32 %v48, %v147
  %v149 = vpop.f32.mrb[0].mxu0
  %150 = vmatprep.mubr.f32.mxu0 0.0
  %151 = vmatmul.mubr.f32.gmra.mrb[0].mxu0 %v66
  %v152 = vpop.f32.mrb[0].mxu0
  %v153 = vadd.f32 %v53, %v152
  %v154 = vpop.f32.mrb[0].mxu0
  %155 = vdwg.mxu0
  %v156 = vtanh.pop %v138
  %v157 = vtanh.pop %v143
  %v158 = vtanh.pop %v148
  %v159 = vtanh.pop %v153
  %v160 = vld [vmem:[%s3] sm:$0xff]
  %v161 = vld [vmem:[%s3 + $0x8] sm:$0xff]
  %v162 = vld [vmem:[%s3 + $0x10] sm:$0xff]
  %v163 = vld [vmem:[%s3 + $0x18] sm:$0xff]
  %v164 = vld [vmem:[%s4] sm:$0xff]
  %v165 = vld [vmem:[%s4 + $0x8] sm:$0xff]
  %v166 = vld [vmem:[%s4 + $0x10] sm:$0xff]
  %v167 = vld [vmem:[%s4 + $0x18] sm:$0xff]
  %169 = vset.pattern.permute.xlu0 0
  %170 = vperm.xlu0 %169, %v164
  %v171 = vpop.permute.xlu0 %170
  %174 = vset.pattern.permute.xlu0 0
  %175 = vperm.xlu0 %174, %v165
  %v176 = vpop.permute.xlu0 %175
  %179 = vset.pattern.permute.xlu0 0
  %180 = vperm.xlu0 %179, %v166
  %v181 = vpop.permute.xlu0 %180
  %184 = vset.pattern.permute.xlu0 0
  %185 = vperm.xlu0 %184, %v167
  %v186 = vpop.permute.xlu0 %185
  %vm188 = vcmask 261120
  %v190 = vsel %vm188, %v160, 0
  %v193 = vsel %vm188, %v161, 0
  %v196 = vsel %vm188, %v162, 0
  %v199 = vsel %vm188, %v163, 0
  %201 = vmatprep.subr.mxu0 0.0
  %202 = vmatpush1.msra.mxu0 %v156
  %203 = vmatprep.subr.mxu0 0.0
  %204 = vmatpush1.msra.mxu0 %v157
  %205 = vmatprep.subr.mxu0 0.0
  %206 = vmatpush1.msra.mxu0 %v158
  %207 = vmatprep.subr.mxu0 0.0
  %208 = vmatpush1.msra.mxu0 %v159
  %209 = vmatprep.subr.mxu0 0.0
  %210 = vmatpush1.msra.mxu0 0.0
  %211 = vmatprep.subr.mxu0 0.0
  %212 = vmatpush1.msra.mxu0 0.0
  %213 = vmatprep.subr.mxu0 0.0
  %214 = vmatpush1.msra.mxu0 0.0
  %215 = vmatprep.subr.mxu0 0.0
  %216 = vmatpush1.msra.mxu0 0.0
  %217 = vmatprep.subr.mxu0 0.0
  %218 = vmatpush1.msra.mxu0 0.0
  %219 = vmatprep.subr.mxu0 0.0
  %220 = vmatpush1.msra.mxu0 0.0
  %221 = vmatprep.subr.mxu0 0.0
  %222 = vmatpush1.msra.mxu0 0.0
  %223 = vmatprep.subr.mxu0 0.0
  %224 = vmatpush1.msra.mxu0 0.0
  %225 = vmatprep.subr.mxu0 0.0
  %226 = vmatpush1.msra.mxu0 0.0
  %227 = vmatprep.subr.mxu0 0.0
  %228 = vmatpush1.msra.mxu0 0.0
  %229 = vmatprep.subr.mxu0 0.0
  %230 = vmatpush1.msra.mxu0 0.0
  %231 = vmatprep.subr.mxu0 0.0
  %232 = vmatpush1.msra.mxu0 0.0
  %233 = vmatprep.subr.mxu0 0.0
  %234 = vmatpush1.msra.mxu0 0.0
  %235 = vmatprep.subr.mxu0 0.0
  %236 = vmatpush1.msra.mxu0 0.0
  %237 = vmatprep.subr.mxu0 0.0
  %238 = vmatpush1.msra.mxu0 0.0
  %239 = vmatprep.subr.mxu0 0.0
  %240 = vmatpush1.msra.mxu0 0.0
  %241 = vmatprep.subr.mxu0 0.0
  %242 = vmatpush1.msra.mxu0 0.0
  %243 = vmatprep.subr.mxu0 0.0
  %244 = vmatpush1.msra.mxu0 0.0
  %245 = vmatprep.subr.mxu0 0.0
  %246 = vmatpush1.msra.mxu0 0.0
  %247 = vmatprep.subr.mxu0 0.0
  %248 = vmatpush1.msra.mxu0 0.0
  %249 = vmatprep.subr.mxu0 0.0
  %250 = vmatpush1.msra.mxu0 0.0
  %251 = vmatprep.subr.mxu0 0.0
  %252 = vmatpush1.msra.mxu0 0.0
  %253 = vmatprep.subr.mxu0 0.0
  %254 = vmatpush1.msra.mxu0 0.0
  %255 = vmatprep.subr.mxu0 0.0
  %256 = vmatpush1.msra.mxu0 0.0
  %257 = vmatprep.subr.mxu0 0.0
  %258 = vmatpush1.msra.mxu0 0.0
  %259 = vmatprep.subr.mxu0 0.0
  %260 = vmatpush1.msra.mxu0 0.0
  %261 = vmatprep.subr.mxu0 0.0
  %262 = vmatpush1.msra.mxu0 0.0
  %263 = vmatprep.subr.mxu0 0.0
  %264 = vmatpush1.msra.mxu0 0.0
  %265 = vmatprep.mubr.f32.mxu0 0.0
  %266 = vmatmul.mubr.f32.gmra.mrb[0].mxu0 %v190
  %v267 = vpop.f32.mrb[0].mxu0
  %v268 = vadd.f32 %v171, %v267
  %v269 = vpop.f32.mrb[0].mxu0
  %270 = vmatprep.mubr.f32.mxu0 0.0
  %271 = vmatmul.mubr.f32.gmra.mrb[0].mxu0 %v193
  %v272 = vpop.f32.mrb[0].mxu0
  %v273 = vadd.f32 %v176, %v272
  %v274 = vpop.f32.mrb[0].mxu0
  %275 = vmatprep.mubr.f32.mxu0 0.0
  %276 = vmatmul.mubr.f32.gmra.mrb[0].mxu0 %v196
  %v277 = vpop.f32.mrb[0].mxu0
  %v278 = vadd.f32 %v181, %v277
  %v279 = vpop.f32.mrb[0].mxu0
  %280 = vmatprep.mubr.f32.mxu0 0.0
  %281 = vmatmul.mubr.f32.gmra.mrb[0].mxu0 %v199
  %v282 = vpop.f32.mrb[0].mxu0
  %v283 = vadd.f32 %v186, %v282
  %v284 = vpop.f32.mrb[0].mxu0
  %285 = vdwg.mxu0
  %v286 = vtanh.pop %v268
  %v287 = vtanh.pop %v273
  %v288 = vtanh.pop %v278
  %v289 = vtanh.pop %v283
  %290 = vxpose.xlu0.b32.start [1/16] %v286, 128
  %291 = vxpose.xlu0.b32.cont [2/16] %v287, 128
  %292 = vxpose.xlu0.b32.cont [3/16] %v288, 128
  %293 = vxpose.xlu0.b32.cont [4/16] %v289, 128
  %294 = vxpose.xlu0.b32.cont [5/16] 0.0, 128
  %295 = vxpose.xlu0.b32.cont [6/16] 0.0, 128
  %296 = vxpose.xlu0.b32.cont [7/16] 0.0, 128
  %297 = vxpose.xlu0.b32.cont [8/16] 0.0, 128
  %298 = vxpose.xlu0.b32.cont [9/16] 0.0, 128
  %299 = vxpose.xlu0.b32.cont [10/16] 0.0, 128
  %300 = vxpose.xlu0.b32.cont [11/16] 0.0, 128
  %301 = vxpose.xlu0.b32.cont [12/16] 0.0, 128
  %302 = vxpose.xlu0.b32.cont [13/16] 0.0, 128
  %303 = vxpose.xlu0.b32.cont [14/16] 0.0, 128
  %304 = vxpose.xlu0.b32.cont [15/16] 0.0, 128
  %305 = vxpose.xlu0.b32.end [16/16] 0.0, 128
  %v306 = vpop.trf.xlu0
  %v307 = vpop.trf.xlu0
  %v308 = vpop.trf.xlu0
  %v309 = vpop.trf.xlu0
  %v310 = vpop.trf.xlu0
  %v311 = vpop.trf.xlu0
  %v312 = vpop.trf.xlu0
  %v313 = vpop.trf.xlu0
  %v314 = vpop.trf.xlu0
  %v315 = vpop.trf.xlu0
  %v316 = vpop.trf.xlu0
  %v317 = vpop.trf.xlu0
  %v318 = vpop.trf.xlu0
  %v319 = vpop.trf.xlu0
  %v320 = vpop.trf.xlu0
  %v321 = vpop.trf.xlu0
  %v322 = vld [vmem:[%s5] sm:$0xf]
  %v323 = vld [vmem:[%s6] sm:$0x1]
  %v325 = vlaneseq
  %v326 = vshrl.u32 %v325, 7
  %v327 = vsub.s32 0, %v326
  %v328 = vrot.slane %v323, %v327
  %v331 = vsel %vm188, %v306, 0
  %v334 = vsel %vm188, %v322, 0
  %336 = vmatprep.subr.mxu0 0.0
  %337 = vmatpush1.xpose.msra.mxu0 %v334
  %338 = vmatprep.subr.mxu0 0.0
  %339 = vmatpush1.xpose.msra.mxu0 0.0
  %340 = vmatprep.subr.mxu0 0.0
  %341 = vmatpush1.xpose.msra.mxu0 0.0
  %342 = vmatprep.subr.mxu0 0.0
  %343 = vmatpush1.xpose.msra.mxu0 0.0
  %344 = vmatprep.subr.mxu0 0.0
  %345 = vmatpush1.xpose.msra.mxu0 0.0
  %346 = vmatprep.subr.mxu0 0.0
  %347 = vmatpush1.xpose.msra.mxu0 0.0
  %348 = vmatprep.subr.mxu0 0.0
  %349 = vmatpush1.xpose.msra.mxu0 0.0
  %350 = vmatprep.subr.mxu0 0.0
  %351 = vmatpush1.xpose.msra.mxu0 0.0
  %352 = vmatprep.subr.mxu0 0.0
  %353 = vmatpush1.xpose.msra.mxu0 0.0
  %354 = vmatprep.subr.mxu0 0.0
  %355 = vmatpush1.xpose.msra.mxu0 0.0
  %356 = vmatprep.subr.mxu0 0.0
  %357 = vmatpush1.xpose.msra.mxu0 0.0
  %358 = vmatprep.subr.mxu0 0.0
  %359 = vmatpush1.xpose.msra.mxu0 0.0
  %360 = vmatprep.subr.mxu0 0.0
  %361 = vmatpush1.xpose.msra.mxu0 0.0
  %362 = vmatprep.subr.mxu0 0.0
  %363 = vmatpush1.xpose.msra.mxu0 0.0
  %364 = vmatprep.subr.mxu0 0.0
  %365 = vmatpush1.xpose.msra.mxu0 0.0
  %366 = vmatprep.subr.mxu0 0.0
  %367 = vmatpush1.xpose.msra.mxu0 0.0
  %368 = vmatprep.subr.mxu0 0.0
  %369 = vmatpush1.xpose.msra.mxu0 0.0
  %370 = vmatprep.subr.mxu0 0.0
  %371 = vmatpush1.xpose.msra.mxu0 0.0
  %372 = vmatprep.subr.mxu0 0.0
  %373 = vmatpush1.xpose.msra.mxu0 0.0
  %374 = vmatprep.subr.mxu0 0.0
  %375 = vmatpush1.xpose.msra.mxu0 0.0
  %376 = vmatprep.subr.mxu0 0.0
  %377 = vmatpush1.xpose.msra.mxu0 0.0
  %378 = vmatprep.subr.mxu0 0.0
  %379 = vmatpush1.xpose.msra.mxu0 0.0
  %380 = vmatprep.subr.mxu0 0.0
  %381 = vmatpush1.xpose.msra.mxu0 0.0
  %382 = vmatprep.subr.mxu0 0.0
  %383 = vmatpush1.xpose.msra.mxu0 0.0
  %384 = vmatprep.subr.mxu0 0.0
  %385 = vmatpush1.xpose.msra.mxu0 0.0
  %386 = vmatprep.subr.mxu0 0.0
  %387 = vmatpush1.xpose.msra.mxu0 0.0
  %388 = vmatprep.subr.mxu0 0.0
  %389 = vmatpush1.xpose.msra.mxu0 0.0
  %390 = vmatprep.subr.mxu0 0.0
  %391 = vmatpush1.xpose.msra.mxu0 0.0
  %392 = vmatprep.subr.mxu0 0.0
  %393 = vmatpush1.xpose.msra.mxu0 0.0
  %394 = vmatprep.subr.mxu0 0.0
  %395 = vmatpush1.xpose.msra.mxu0 0.0
  %396 = vmatprep.subr.mxu0 0.0
  %397 = vmatpush1.xpose.msra.mxu0 0.0
  %398 = vmatprep.subr.mxu0 0.0
  %399 = vmatpush1.xpose.msra.mxu0 0.0
  %400 = vmatprep.mubr.f32.mxu0 0.0
  %401 = vmatmul.mubr.f32.gmra.mrb[0].mxu0 %v331
  %v402 = vpop.f32.mrb[0].mxu0
  %v403 = vadd.f32 %v328, %v402
  %v404 = vpop.f32.mrb[0].mxu0
  %405 = vdwg.mxu0
  %406 = vst.msk [vmem:[%s7] sm:$0xff] %vm55, %v403
  // Predicated region
  $region30: #{_densenet_impl.1} parent=0 // pred_check
    _
  $region31: #{_densenet_impl.1} parent=0 // pred_check_branch
    %408 = sbr.rel (0) target = $region33
  $region32: #{_densenet_impl.1} parent=0 // pred_region
    _
  $region33: #{_densenet_impl.1} parent=0 // pred_fallthru
    _
  // Predicated region
  $region34: #{_densenet_impl.1} parent=0 // pred_check
    _
  $region35: #{_densenet_impl.1} parent=0 // pred_check_branch
    %410 = sbr.rel (0) target = $region37
  $region36: #{_densenet_impl.1} parent=0 // pred_region
    _
  $region37: #{_densenet_impl.1} parent=0 // pred_fallthru
    _

</llo_original>
